<compile_context>
chip_gen: v5e
topology: v5e:2x2
jax: 0.10.0
libtpu: 0.0.40
codegen_flags: <defaults>
</compile_context>

<pallas_src>
import jax
import jax.numpy as jnp
from jax.experimental import pallas as pl
from jax.experimental.pallas import tpu as pltpu

INPUT_SIZE = 28 * 28      # 784
LABELS_DIM = 10
HIDDEN_DIM = 32
OUTPUT_SIZE = 1
BATCH = 8

LANE = 128                # all hidden/output feature dims padded to this


def _leaky_relu(v, slope=0.2):
    # valid for 0 < slope < 1: max(v, slope*v) == leaky_relu(v)
    return jnp.maximum(v, slope * v)


def discriminator_kernel(x_ref, y_ref,
                         w1i_ref, w1l_ref,
                         w2_ref, w3_ref, w4_ref,
                         b_ref,
                         o_ref):
    # x_ref: [bb, 784] fp32, y_ref: [bb, 10] fp32 (cast to bf16 in-VMEM),
    # weights bf16, biases fp32 [4,128], o_ref: [bb, 128] bf16.
    b = b_ref[...]                               # [4, 128] fp32

    xb = x_ref[...].astype(jnp.bfloat16)         # cast on the VMEM tile, not in HBM
    yb = y_ref[...].astype(jnp.bfloat16)

    # hidden layer 1: (784 | 10) -> 128   (split contraction avoids the concat)
    h = jnp.dot(xb, w1i_ref[...], preferred_element_type=jnp.float32)
    h = h + jnp.dot(yb, w1l_ref[...], preferred_element_type=jnp.float32)
    h = _leaky_relu(h + b[0:1, :])
    # dropout(0.3): identity in eval mode

    # hidden layer 2: 128 -> 64 (padded to 128; padding lanes stay exactly 0)
    h = jnp.dot(h.astype(jnp.bfloat16), w2_ref[...],
                preferred_element_type=jnp.float32)
    h = _leaky_relu(h + b[1:2, :])

    # hidden layer 3: 64 -> 32 (padded to 128)
    h = jnp.dot(h.astype(jnp.bfloat16), w3_ref[...],
                preferred_element_type=jnp.float32)
    h = _leaky_relu(h + b[2:3, :])

    # output layer: 32 -> 1 (padded to 128; wrapper slices column 0)
    out = jnp.dot(h.astype(jnp.bfloat16), w4_ref[...],
                  preferred_element_type=jnp.float32) + b[3:4, :]
    o_ref[...] = out.astype(o_ref.dtype)         # bf16 writeback (halves output DMA)


def _choose_batch_tile(B, block_b):
    """Pick the batch tile: big tiles for HBM-roofline, but >=2 grid steps once
    B >= 64 so both v7x TensorCores get work; multiple of 16 for bf16 packing."""
    bb = min(block_b, B)
    if B >= 64:
        half = -(-B // 2)                      # cdiv(B, 2)
        half = ((half + 15) // 16) * 16        # round up to multiple of 16
        bb = min(bb, half)
    return max(bb, 1)


def discriminator_forward(x, y, kernel_params, block_b=512):
    """x: [B, 1, 28, 28] (any [B, ...] flattening to 784) fp32, y: [B, 10] fp32."""
    B = x.shape[0]
    x_flat = x.reshape(B, -1)                    # [B, 784] fp32 — no wrapper cast
    y_f = y.astype(jnp.float32)                  # [B, 10]  fp32

    w1_img, w1_lbl, w2, w3, w4, biases = kernel_params

    bb = _choose_batch_tile(B, block_b)
    grid = (pl.cdiv(B, bb),)

    out = pl.pallas_call(
        discriminator_kernel,
        out_shape=jax.ShapeDtypeStruct((B, LANE), jnp.bfloat16),
        grid_spec=pltpu.PrefetchScalarGridSpec(
            num_scalar_prefetch=0,
            grid=grid,
            in_specs=[
                pl.BlockSpec((bb, INPUT_SIZE), lambda i: (i, 0)),    # x tile (fp32)
                pl.BlockSpec((bb, LABELS_DIM), lambda i: (i, 0)),    # y tile (fp32)
                pl.BlockSpec((INPUT_SIZE, LANE), lambda i: (0, 0)),  # w1_img (resident)
                pl.BlockSpec((LABELS_DIM, LANE), lambda i: (0, 0)),  # w1_lbl (resident)
                pl.BlockSpec((LANE, LANE), lambda i: (0, 0)),        # w2
                pl.BlockSpec((LANE, LANE), lambda i: (0, 0)),        # w3
                pl.BlockSpec((LANE, LANE), lambda i: (0, 0)),        # w4
                pl.BlockSpec((4, LANE), lambda i: (0, 0)),           # packed biases
            ],
            out_specs=pl.BlockSpec((bb, LANE), lambda i: (i, 0)),
        ),
        compiler_params=pltpu.CompilerParams(
            dimension_semantics=("parallel",)),
    )(x_flat, y_f, w1_img, w1_lbl, w2, w3, w4, biases)

    # real logit is column 0 of the lane-padded slab; restore fp32 for downstream
    return out[:, :OUTPUT_SIZE].astype(jnp.float32)


def init_params(key):
    """Deterministic fp32 init matching torch.nn.Linear; weights stored [in, out]."""
    dims = [
        (INPUT_SIZE + LABELS_DIM, HIDDEN_DIM * 4),   # 794 -> 128
        (HIDDEN_DIM * 4, HIDDEN_DIM * 2),            # 128 -> 64
        (HIDDEN_DIM * 2, HIDDEN_DIM),                # 64  -> 32
        (HIDDEN_DIM, OUTPUT_SIZE),                   # 32  -> 1
    ]
    params = []
    for fan_in, fan_out in dims:
        key, kw, kb = jax.random.split(key, 3)
        bound = 1.0 / (fan_in ** 0.5)
        w = jax.random.uniform(kw, (fan_in, fan_out), jnp.float32, -bound, bound)
        b = jax.random.uniform(kb, (fan_out,), jnp.float32, -bound, bound)
        params.append((w, b))
    return params


def pack_params(params):
    """Convert fp32 [in,out] params into the padded bf16 layout the kernel expects."""
    (w1, b1), (w2, b2), (w3, b3), (w4, b4) = params

    w1_img = w1[:INPUT_SIZE].astype(jnp.bfloat16)    # [784, 128]
    w1_lbl = w1[INPUT_SIZE:].astype(jnp.bfloat16)    # [10, 128]

    def pad_w(w):  # zero-pad to [128, 128]; zero rows/cols leave results unchanged
        buf = jnp.zeros((LANE, LANE), jnp.bfloat16)
        return buf.at[:w.shape[0], :w.shape[1]].set(w.astype(jnp.bfloat16))

    w2p, w3p, w4p = pad_w(w2), pad_w(w3), pad_w(w4)

    biases = jnp.zeros((4, LANE), jnp.float32)
    biases = biases.at[0, :b1.shape[0]].set(b1)
    biases = biases.at[1, :b2.shape[0]].set(b2)
    biases = biases.at[2, :b3.shape[0]].set(b3)
    biases = biases.at[3, :b4.shape[0]].set(b4)

    return w1_img, w1_lbl, w2p, w3p, w4p, biases


def reference_forward(x, y, params):
    """Pure-JAX fp32 reference for sanity checking."""
    B = x.shape[0]
    h = jnp.concatenate([x.reshape(B, -1), y], axis=1).astype(jnp.float32)
    (w1, b1), (w2, b2), (w3, b3), (w4, b4) = params
    for w, b in ((w1, b1), (w2, b2), (w3, b3)):
        h = _leaky_relu(h @ w + b)
    return h @ w4 + b4


if __name__ == "__main__":
    key = jax.random.PRNGKey(0)
    k_params, k_x, k_y = jax.random.split(key, 3)

    params = init_params(k_params)
    kernel_params = pack_params(params)

    # deterministic example inputs: MNIST-style image batch + one-hot labels
    x = jax.random.normal(k_x, (BATCH, 1, 28, 28), jnp.float32)
    labels = jax.random.randint(k_y, (BATCH,), 0, LABELS_DIM)
    y = jax.nn.one_hot(labels, LABELS_DIM, dtype=jnp.float32)

    out = discriminator_forward(x, y, kernel_params)
    out = jax.block_until_ready(out)

    ref = reference_forward(x, y, params)
    assert out.shape == (BATCH, OUTPUT_SIZE), out.shape
    # bf16 matmul operands / bf16 logit writeback (fp32 accumulation) -> loosened tol
    assert jnp.allclose(out, ref, atol=5e-2, rtol=5e-2), (out, ref)

    print("KERNEL_OK")
</pallas_src>

<mosaic_0001>
module attributes {stable_mosaic.version = 11 : i64} {
  func.func @discriminator_kernel(%arg0: i32, %arg1: memref<8x784xf32, #tpu.memory_space<vmem>>, %arg2: memref<8x10xf32, #tpu.memory_space<vmem>>, %arg3: memref<784x128xbf16, #tpu.memory_space<vmem>>, %arg4: memref<10x128xbf16, #tpu.memory_space<vmem>>, %arg5: memref<128x128xbf16, #tpu.memory_space<vmem>>, %arg6: memref<128x128xbf16, #tpu.memory_space<vmem>>, %arg7: memref<128x128xbf16, #tpu.memory_space<vmem>>, %arg8: memref<4x128xf32, #tpu.memory_space<vmem>>, %arg9: memref<8x128xbf16, #tpu.memory_space<vmem>>) attributes {dimension_semantics = [#tpu.dimension_semantics<parallel>], iteration_bounds = array<i64: 1>, scalar_prefetch = 0 : i64, scratch_operands = 0 : i64, tpu.core_type = #tpu.core_type<tc>, window_params = [{transform_indices = @transform_0, window_bounds = array<i64: 8, 784>}, {transform_indices = @transform_1, window_bounds = array<i64: 8, 10>}, {pipeline_mode = #tpu.pipeline_mode<synchronous>, transform_indices = @transform_2, window_bounds = array<i64: 784, 128>}, {pipeline_mode = #tpu.pipeline_mode<synchronous>, transform_indices = @transform_3, window_bounds = array<i64: 10, 128>}, {pipeline_mode = #tpu.pipeline_mode<synchronous>, transform_indices = @transform_4, window_bounds = array<i64: 128, 128>}, {pipeline_mode = #tpu.pipeline_mode<synchronous>, transform_indices = @transform_5, window_bounds = array<i64: 128, 128>}, {pipeline_mode = #tpu.pipeline_mode<synchronous>, transform_indices = @transform_6, window_bounds = array<i64: 128, 128>}, {pipeline_mode = #tpu.pipeline_mode<synchronous>, transform_indices = @transform_7, window_bounds = array<i64: 4, 128>}, {transform_indices = @transform_8, window_bounds = array<i64: 8, 128>}]} {
    %c0 = arith.constant 0 : index
    %c0_0 = arith.constant 0 : index
    %0 = vector.load %arg8[%c0, %c0_0] : memref<4x128xf32, #tpu.memory_space<vmem>>, vector<4x128xf32>
    %c0_1 = arith.constant 0 : index
    %c0_2 = arith.constant 0 : index
    %1 = vector.load %arg1[%c0_1, %c0_2] : memref<8x784xf32, #tpu.memory_space<vmem>>, vector<8x784xf32>
    %2 = arith.truncf %1 : vector<8x784xf32> to vector<8x784xbf16>
    %c0_3 = arith.constant 0 : index
    %c0_4 = arith.constant 0 : index
    %3 = vector.load %arg2[%c0_3, %c0_4] : memref<8x10xf32, #tpu.memory_space<vmem>>, vector<8x10xf32>
    %4 = arith.truncf %3 : vector<8x10xf32> to vector<8x10xbf16>
    %c0_5 = arith.constant 0 : index
    %c0_6 = arith.constant 0 : index
    %5 = vector.load %arg3[%c0_5, %c0_6] : memref<784x128xbf16, #tpu.memory_space<vmem>>, vector<784x128xbf16>
    %cst = arith.constant dense<0.000000e+00> : vector<8x128xf32>
    %6 = tpu.matmul %2, %5, %cst {dimension_numbers = #tpu.dot_dimension_numbers<[1], [0], [0], [1], [0, 0, 1, 1], [], []>} : vector<8x784xbf16>, vector<784x128xbf16>, vector<8x128xf32> -> vector<8x128xf32>
    %c0_7 = arith.constant 0 : index
    %c0_8 = arith.constant 0 : index
    %7 = vector.load %arg4[%c0_7, %c0_8] : memref<10x128xbf16, #tpu.memory_space<vmem>>, vector<10x128xbf16>
    %cst_9 = arith.constant dense<0.000000e+00> : vector<8x128xf32>
    %8 = tpu.matmul %4, %7, %cst_9 {dimension_numbers = #tpu.dot_dimension_numbers<[1], [0], [0], [1], [0, 0, 1, 1], [], []>} : vector<8x10xbf16>, vector<10x128xbf16>, vector<8x128xf32> -> vector<8x128xf32>
    %9 = arith.addf %6, %8 : vector<8x128xf32>
    %10 = vector.extract_strided_slice %0 {offsets = [0, 0], sizes = [1, 128], strides = [1, 1]} : vector<4x128xf32> to vector<1x128xf32>
    %11 = vector.broadcast %10 : vector<1x128xf32> to vector<8x128xf32>
    %12 = arith.addf %9, %11 : vector<8x128xf32>
    %cst_10 = arith.constant 2.000000e-01 : f32
    %13 = vector.broadcast %cst_10 : f32 to vector<8x128xf32>
    %14 = arith.mulf %13, %12 : vector<8x128xf32>
    %15 = arith.maximumf %12, %14 : vector<8x128xf32>
    %16 = arith.truncf %15 : vector<8x128xf32> to vector<8x128xbf16>
    %c0_11 = arith.constant 0 : index
    %c0_12 = arith.constant 0 : index
    %17 = vector.load %arg5[%c0_11, %c0_12] : memref<128x128xbf16, #tpu.memory_space<vmem>>, vector<128x128xbf16>
    %cst_13 = arith.constant dense<0.000000e+00> : vector<8x128xf32>
    %18 = tpu.matmul %16, %17, %cst_13 {dimension_numbers = #tpu.dot_dimension_numbers<[1], [0], [0], [1], [0, 0, 1, 1], [], []>} : vector<8x128xbf16>, vector<128x128xbf16>, vector<8x128xf32> -> vector<8x128xf32>
    %19 = vector.extract_strided_slice %0 {offsets = [1, 0], sizes = [1, 128], strides = [1, 1]} : vector<4x128xf32> to vector<1x128xf32>
    %20 = vector.broadcast %19 : vector<1x128xf32> to vector<8x128xf32>
    %21 = arith.addf %18, %20 : vector<8x128xf32>
    %cst_14 = arith.constant 2.000000e-01 : f32
    %22 = vector.broadcast %cst_14 : f32 to vector<8x128xf32>
    %23 = arith.mulf %22, %21 : vector<8x128xf32>
    %24 = arith.maximumf %21, %23 : vector<8x128xf32>
    %25 = arith.truncf %24 : vector<8x128xf32> to vector<8x128xbf16>
    %c0_15 = arith.constant 0 : index
    %c0_16 = arith.constant 0 : index
    %26 = vector.load %arg6[%c0_15, %c0_16] : memref<128x128xbf16, #tpu.memory_space<vmem>>, vector<128x128xbf16>
    %cst_17 = arith.constant dense<0.000000e+00> : vector<8x128xf32>
    %27 = tpu.matmul %25, %26, %cst_17 {dimension_numbers = #tpu.dot_dimension_numbers<[1], [0], [0], [1], [0, 0, 1, 1], [], []>} : vector<8x128xbf16>, vector<128x128xbf16>, vector<8x128xf32> -> vector<8x128xf32>
    %28 = vector.extract_strided_slice %0 {offsets = [2, 0], sizes = [1, 128], strides = [1, 1]} : vector<4x128xf32> to vector<1x128xf32>
    %29 = vector.broadcast %28 : vector<1x128xf32> to vector<8x128xf32>
    %30 = arith.addf %27, %29 : vector<8x128xf32>
    %cst_18 = arith.constant 2.000000e-01 : f32
    %31 = vector.broadcast %cst_18 : f32 to vector<8x128xf32>
    %32 = arith.mulf %31, %30 : vector<8x128xf32>
    %33 = arith.maximumf %30, %32 : vector<8x128xf32>
    %34 = arith.truncf %33 : vector<8x128xf32> to vector<8x128xbf16>
    %c0_19 = arith.constant 0 : index
    %c0_20 = arith.constant 0 : index
    %35 = vector.load %arg7[%c0_19, %c0_20] : memref<128x128xbf16, #tpu.memory_space<vmem>>, vector<128x128xbf16>
    %cst_21 = arith.constant dense<0.000000e+00> : vector<8x128xf32>
    %36 = tpu.matmul %34, %35, %cst_21 {dimension_numbers = #tpu.dot_dimension_numbers<[1], [0], [0], [1], [0, 0, 1, 1], [], []>} : vector<8x128xbf16>, vector<128x128xbf16>, vector<8x128xf32> -> vector<8x128xf32>
    %37 = vector.extract_strided_slice %0 {offsets = [3, 0], sizes = [1, 128], strides = [1, 1]} : vector<4x128xf32> to vector<1x128xf32>
    %38 = vector.broadcast %37 : vector<1x128xf32> to vector<8x128xf32>
    %39 = arith.addf %36, %38 : vector<8x128xf32>
    %40 = arith.truncf %39 : vector<8x128xf32> to vector<8x128xbf16>
    %c0_22 = arith.constant 0 : index
    %c0_23 = arith.constant 0 : index
    %41 = vector.load %arg9[%c0_22, %c0_23] : memref<8x128xbf16, #tpu.memory_space<vmem>>, vector<8x128xbf16>
    tpu.vector_store %arg9[%c0_22, %c0_23], %40 {strides = array<i32>} : memref<8x128xbf16, #tpu.memory_space<vmem>>, vector<8x128xbf16>,
    return
  }
  func.func @transform_0(%arg0: i32) -> (i32, i32) {
    %c0_i32 = arith.constant 0 : i32
    %c0_i32_0 = arith.constant 0 : i32
    return %arg0, %c0_i32 : i32, i32
  }
  func.func @transform_1(%arg0: i32) -> (i32, i32) {
    %c0_i32 = arith.constant 0 : i32
    %c0_i32_0 = arith.constant 0 : i32
    return %arg0, %c0_i32 : i32, i32
  }
  func.func @transform_2(%arg0: i32) -> (i32, i32) {
    %c0_i32 = arith.constant 0 : i32
    %c0_i32_0 = arith.constant 0 : i32
    %c0_i32_1 = arith.constant 0 : i32
    return %c0_i32, %c0_i32_0 : i32, i32
  }
  func.func @transform_3(%arg0: i32) -> (i32, i32) {
    %c0_i32 = arith.constant 0 : i32
    %c0_i32_0 = arith.constant 0 : i32
    %c0_i32_1 = arith.constant 0 : i32
    return %c0_i32, %c0_i32_0 : i32, i32
  }
  func.func @transform_4(%arg0: i32) -> (i32, i32) {
    %c0_i32 = arith.constant 0 : i32
    %c0_i32_0 = arith.constant 0 : i32
    %c0_i32_1 = arith.constant 0 : i32
    return %c0_i32, %c0_i32_0 : i32, i32
  }
  func.func @transform_5(%arg0: i32) -> (i32, i32) {
    %c0_i32 = arith.constant 0 : i32
    %c0_i32_0 = arith.constant 0 : i32
    %c0_i32_1 = arith.constant 0 : i32
    return %c0_i32, %c0_i32_0 : i32, i32
  }
  func.func @transform_6(%arg0: i32) -> (i32, i32) {
    %c0_i32 = arith.constant 0 : i32
    %c0_i32_0 = arith.constant 0 : i32
    %c0_i32_1 = arith.constant 0 : i32
    return %c0_i32, %c0_i32_0 : i32, i32
  }
  func.func @transform_7(%arg0: i32) -> (i32, i32) {
    %c0_i32 = arith.constant 0 : i32
    %c0_i32_0 = arith.constant 0 : i32
    %c0_i32_1 = arith.constant 0 : i32
    return %c0_i32, %c0_i32_0 : i32, i32
  }
  func.func @transform_8(%arg0: i32) -> (i32, i32) {
    %c0_i32 = arith.constant 0 : i32
    %c0_i32_0 = arith.constant 0 : i32
    return %arg0, %c0_i32 : i32, i32
  }
}

</mosaic_0001>

<llo_original>
// kernel: tpu_custom_call.1
$region0: #{tpu_custom_call.1}
  #allocation0 [shape = 'u32[]', space=smem, size = 0x4, offset = 0x4, fixed_abs, tag = 'smem constant byte address 0x4 - core index']
  #allocation1 [shape = 'u32[72,128]{1,0:T(1,128)}', space=vmem, size = 0x9000, scoped, tag = 'internal scratch']
  %s0 = inlined_call_operand.hbm [shape: f32[8,784], index: 0, kind: input, shape index: {}]
  %s1 = inlined_call_operand.hbm [shape: f32[8,10], index: 1, kind: input, shape index: {}]
  %s2 = inlined_call_operand.hbm [shape: bf16[784,128], index: 2, kind: input, shape index: {}]
  %s3 = inlined_call_operand.hbm [shape: bf16[10,128], index: 3, kind: input, shape index: {}]
  %s4 = inlined_call_operand.hbm [shape: bf16[128,128], index: 4, kind: input, shape index: {}]
  %s5 = inlined_call_operand.hbm [shape: bf16[128,128], index: 5, kind: input, shape index: {}]
  %s6 = inlined_call_operand.hbm [shape: bf16[128,128], index: 6, kind: input, shape index: {}]
  %s7 = inlined_call_operand.vmem [shape: f32[4,128], index: 7, kind: input, shape index: {}]
  %s8 = inlined_call_operand.hbm [shape: bf16[8,128], index: 8, kind: output, shape index: {}]
  %s9 = sld [smem:[#allocation0]]
  $region70: #{tpu_custom_call.1} parent=0
    _
  %s11 = ssub.s32 1, %s9
  %s12 = scalar_select 0, %s11, %s9
  $region1: #{tpu_custom_call.1} parent=0
    #allocation2 [shape = 'u8[28672]{0}', space=vmem, size = 0x7000, scoped, tag = 'input window, operand 0, single buffered']
    #allocation3 [shape = 's32[1]{0}', space=sflag, size = 0x4, scoped, tag = 'scoped memory for tpu_custom_call.1']
    #allocation4 [shape = 's32[1]{0}', space=sflag, size = 0x4, scoped, tag = 'scoped memory for tpu_custom_call.1']
    #allocation5 [shape = 'u8[4096]{0}', space=vmem, size = 0x1000, scoped, tag = 'input window, operand 1, single buffered']
    #allocation6 [shape = 's32[1]{0}', space=sflag, size = 0x4, scoped, tag = 'scoped memory for tpu_custom_call.1']
    #allocation7 [shape = 'u8[200704]{0}', space=vmem, size = 0x31000, scoped, tag = 'input window, operand 2, single buffered']
    #allocation8 [shape = 'u8[4096]{0}', space=vmem, size = 0x1000, scoped, tag = 'input window, operand 3, single buffered']
    #allocation9 [shape = 's32[1]{0}', space=sflag, size = 0x4, scoped, tag = 'scoped memory for tpu_custom_call.1']
    #allocation10 [shape = 'u8[32768]{0}', space=vmem, size = 0x8000, scoped, tag = 'input window, operand 4, single buffered']
    #allocation11 [shape = 'u8[32768]{0}', space=vmem, size = 0x8000, scoped, tag = 'input window, operand 5, single buffered']
    #allocation12 [shape = 's32[1]{0}', space=sflag, size = 0x4, scoped, tag = 'scoped memory for tpu_custom_call.1']
    #allocation13 [shape = 'u8[32768]{0}', space=vmem, size = 0x8000, scoped, tag = 'input window, operand 6, single buffered']
    #allocation14 [shape = 'u8[2048]{0}', space=vmem, size = 0x800, scoped, tag = 'output window, operand 0, single buffered']
    %13 = vsyncpa [#allocation3], 0
    %14 = vsyncpa [#allocation6], 0
    %15 = vsyncpa [#allocation9], 0
    %16 = vsyncpa [#allocation12], 0
    %17 = vsyncpa [#allocation4], 0
    // Predicated region
    $region2: #{tpu_custom_call.1} parent=1 // pred_check
      _
    $region3: #{tpu_custom_call.1} parent=1 // pred_check_branch
      %19 = sbr.rel (0) target = $region5
    $region4: #{tpu_custom_call.1} parent=1 // pred_region
      %21 = vsyncadd [#allocation3], 0
      %s23 = sshll.u32 %s0, 4
      %s24 = int_to_ptr.hbm [resolvable:$true] %s23
      %s25 = sshll.u32 [#allocation2], 4
      %s26 = int_to_ptr.vmem [resolvable:$true] %s25
      %28 = dma.hbm_to_vmem [thread:$0]  %s24, 896, %s26, [#allocation3]
    $region5: #{tpu_custom_call.1} parent=1 // pred_fallthru
      _
    // Predicated region
    $region6: #{tpu_custom_call.1} parent=1 // pred_check
      _
    $region7: #{tpu_custom_call.1} parent=1 // pred_check_branch
      %30 = sbr.rel (0) target = $region9
    $region8: #{tpu_custom_call.1} parent=1 // pred_region
      %32 = vsyncadd [#allocation6], 0
      %s34 = sshll.u32 %s1, 4
      %s35 = int_to_ptr.hbm [resolvable:$true] %s34
      %s36 = sshll.u32 [#allocation5], 4
      %s37 = int_to_ptr.vmem [resolvable:$true] %s36
      %39 = dma.hbm_to_vmem [thread:$0]  %s35, 128, %s37, [#allocation6]
    $region9: #{tpu_custom_call.1} parent=1 // pred_fallthru
      _
    // Predicated region
    $region10: #{tpu_custom_call.1} parent=1 // pred_check
      _
    $region11: #{tpu_custom_call.1} parent=1 // pred_check_branch
      %41 = sbr.rel (0) target = $region13
    $region12: #{tpu_custom_call.1} parent=1 // pred_region
      %43 = vsyncadd [#allocation6], 0
      %s44 = sshll.u32 %s2, 4
      %s45 = int_to_ptr.hbm [resolvable:$true] %s44
      %s46 = sshll.u32 [#allocation7], 4
      %s47 = int_to_ptr.vmem [resolvable:$true] %s46
      %52 = dma.hbm_to_vmem [thread:$0]  %s45, 6272, %s47, [#allocation6], 64, 64, 4
    $region13: #{tpu_custom_call.1} parent=1 // pred_fallthru
      _
    // Predicated region
    $region14: #{tpu_custom_call.1} parent=1 // pred_check
      _
    $region15: #{tpu_custom_call.1} parent=1 // pred_check_branch
      %54 = sbr.rel (0) target = $region17
    $region16: #{tpu_custom_call.1} parent=1 // pred_region
      %56 = vsyncadd [#allocation9], 0
      %s57 = sshll.u32 %s3, 4
      %s58 = int_to_ptr.hbm [resolvable:$true] %s57
      %s59 = sshll.u32 [#allocation8], 4
      %s60 = int_to_ptr.vmem [resolvable:$true] %s59
      %65 = dma.hbm_to_vmem [thread:$0]  %s58, 128, %s60, [#allocation9], 64, 64, 4
    $region17: #{tpu_custom_call.1} parent=1 // pred_fallthru
      _
    // Predicated region
    $region18: #{tpu_custom_call.1} parent=1 // pred_check
      _
    $region19: #{tpu_custom_call.1} parent=1 // pred_check_branch
      %67 = sbr.rel (0) target = $region21
    $region20: #{tpu_custom_call.1} parent=1 // pred_region
      %69 = vsyncadd [#allocation9], 0
      %s70 = sshll.u32 %s4, 4
      %s71 = int_to_ptr.hbm [resolvable:$true] %s70
      %s72 = sshll.u32 [#allocation10], 4
      %s73 = int_to_ptr.vmem [resolvable:$true] %s72
      %78 = dma.hbm_to_vmem [thread:$0]  %s71, 1024, %s73, [#allocation9], 64, 64, 4
    $region21: #{tpu_custom_call.1} parent=1 // pred_fallthru
      _
    // Predicated region
    $region22: #{tpu_custom_call.1} parent=1 // pred_check
      _
    $region23: #{tpu_custom_call.1} parent=1 // pred_check_branch
      %80 = sbr.rel (0) target = $region25
    $region24: #{tpu_custom_call.1} parent=1 // pred_region
      %82 = vsyncadd [#allocation12], 0
      %s83 = sshll.u32 %s5, 4
      %s84 = int_to_ptr.hbm [resolvable:$true] %s83
      %s85 = sshll.u32 [#allocation11], 4
      %s86 = int_to_ptr.vmem [resolvable:$true] %s85
      %91 = dma.hbm_to_vmem [thread:$0]  %s84, 1024, %s86, [#allocation12], 64, 64, 4
    $region25: #{tpu_custom_call.1} parent=1 // pred_fallthru
      _
    // Predicated region
    $region26: #{tpu_custom_call.1} parent=1 // pred_check
      _
    $region27: #{tpu_custom_call.1} parent=1 // pred_check_branch
      %93 = sbr.rel (0) target = $region29
    $region28: #{tpu_custom_call.1} parent=1 // pred_region
      %95 = vsyncadd [#allocation12], 0
      %s96 = sshll.u32 %s6, 4
      %s97 = int_to_ptr.hbm [resolvable:$true] %s96
      %s98 = sshll.u32 [#allocation13], 4
      %s99 = int_to_ptr.vmem [resolvable:$true] %s98
      %104 = dma.hbm_to_vmem [thread:$0]  %s97, 1024, %s99, [#allocation12], 64, 64, 4
    $region29: #{tpu_custom_call.1} parent=1 // pred_fallthru
      _
    // Predicated region
    $region30: #{tpu_custom_call.1} parent=1 // pred_check
      _
    $region31: #{tpu_custom_call.1} parent=1 // pred_check_branch
      %106 = sbr.rel (0) target = $region33
    $region32: #{tpu_custom_call.1} parent=1 // pred_region
      _
    $region33: #{tpu_custom_call.1} parent=1 // pred_fallthru
      _
    // Predicated region
    $region34: #{tpu_custom_call.1} parent=1 // pred_check
      _
    $region35: #{tpu_custom_call.1} parent=1 // pred_check_branch
      %108 = sbr.rel (0) target = $region37
    $region36: #{tpu_custom_call.1} parent=1 // pred_region
      %110 = dma.done [#allocation3], 896
    $region37: #{tpu_custom_call.1} parent=1 // pred_fallthru
      _
    // Predicated region
    $region38: #{tpu_custom_call.1} parent=1 // pred_check
      _
    $region39: #{tpu_custom_call.1} parent=1 // pred_check_branch
      %112 = sbr.rel (0) target = $region41
    $region40: #{tpu_custom_call.1} parent=1 // pred_region
      %114 = dma.done [#allocation6], 128
    $region41: #{tpu_custom_call.1} parent=1 // pred_fallthru
      _
    // Predicated region
    $region42: #{tpu_custom_call.1} parent=1 // pred_check
      _
    $region43: #{tpu_custom_call.1} parent=1 // pred_check_branch
      %116 = sbr.rel (0) target = $region45
    $region44: #{tpu_custom_call.1} parent=1 // pred_region
      %118 = dma.done [#allocation6], 6272
    $region45: #{tpu_custom_call.1} parent=1 // pred_fallthru
      _
    // Predicated region
    $region46: #{tpu_custom_call.1} parent=1 // pred_check
      _
    $region47: #{tpu_custom_call.1} parent=1 // pred_check_branch
      %120 = sbr.rel (0) target = $region49
    $region48: #{tpu_custom_call.1} parent=1 // pred_region
      %122 = dma.done [#allocation9], 128
    $region49: #{tpu_custom_call.1} parent=1 // pred_fallthru
      _
    // Predicated region
    $region50: #{tpu_custom_call.1} parent=1 // pred_check
      _
    $region51: #{tpu_custom_call.1} parent=1 // pred_check_branch
      %124 = sbr.rel (0) target = $region53
    $region52: #{tpu_custom_call.1} parent=1 // pred_region
      %126 = dma.done [#allocation9], 1024
    $region53: #{tpu_custom_call.1} parent=1 // pred_fallthru
      _
    // Predicated region
    $region54: #{tpu_custom_call.1} parent=1 // pred_check
      _
    $region55: #{tpu_custom_call.1} parent=1 // pred_check_branch
      %128 = sbr.rel (0) target = $region57
    $region56: #{tpu_custom_call.1} parent=1 // pred_region
      %130 = dma.done [#allocation12], 1024
    $region57: #{tpu_custom_call.1} parent=1 // pred_fallthru
      _
    // Predicated region
    $region58: #{tpu_custom_call.1} parent=1 // pred_check
      _
    $region59: #{tpu_custom_call.1} parent=1 // pred_check_branch
      %132 = sbr.rel (0) target = $region61
    $region60: #{tpu_custom_call.1} parent=1 // pred_region
      %134 = dma.done [#allocation12], 1024
    $region61: #{tpu_custom_call.1} parent=1 // pred_fallthru
      _
    %v136 = vld [vmem:[%s7] sm:$0xf]
    %v137 = vld [vmem:[#allocation2] sm:$0xff]
    %v138 = vld [vmem:[#allocation2 + $0x8] sm:$0xff]
    %v139 = vld [vmem:[#allocation2 + $0x10] sm:$0xff]
    %v140 = vld [vmem:[#allocation2 + $0x18] sm:$0xff]
    %v141 = vld [vmem:[#allocation2 + $0x20] sm:$0xff]
    %v142 = vld [vmem:[#allocation2 + $0x28] sm:$0xff]
    %v143 = vld [vmem:[#allocation2 + $0x30] sm:$0xff]
    %v144 = vpack.c.bf16 %v137, %v137
    %v145 = vpack.c.bf16 %v138, %v138
    %v146 = vpack.c.bf16 %v139, %v139
    %v147 = vpack.c.bf16 %v140, %v140
    %v148 = vpack.c.bf16 %v141, %v141
    %v149 = vpack.c.bf16 %v142, %v142
    %v150 = vpack.c.bf16 %v143, %v143
    %v151 = vld [vmem:[#allocation5] sm:$0xff]
    %v152 = vpack.c.bf16 %v151, %v151
    %v153 = vld [vmem:[#allocation7] sm:$0xf]
    %v154 = vld [vmem:[#allocation7 + $0x4] sm:$0xf]
    %v155 = vld [vmem:[#allocation7 + $0x8] sm:$0xf]
    %v156 = vld [vmem:[#allocation7 + $0xc] sm:$0xf]
    %v157 = vld [vmem:[#allocation7 + $0x10] sm:$0xf]
    %v158 = vld [vmem:[#allocation7 + $0x14] sm:$0xf]
    %v159 = vld [vmem:[#allocation7 + $0x18] sm:$0xf]
    %v160 = vld [vmem:[#allocation7 + $0x1c] sm:$0xf]
    %v161 = vld [vmem:[#allocation7 + $0x20] sm:$0xf]
    %v162 = vld [vmem:[#allocation7 + $0x24] sm:$0xf]
    %v163 = vld [vmem:[#allocation7 + $0x28] sm:$0xf]
    %v164 = vld [vmem:[#allocation7 + $0x2c] sm:$0xf]
    %v165 = vld [vmem:[#allocation7 + $0x30] sm:$0xf]
    %v166 = vld [vmem:[#allocation7 + $0x34] sm:$0xf]
    %v167 = vld [vmem:[#allocation7 + $0x38] sm:$0xf]
    %v168 = vld [vmem:[#allocation7 + $0x3c] sm:$0xf]
    %v169 = vld [vmem:[#allocation7 + $0x40] sm:$0xf]
    %v170 = vld [vmem:[#allocation7 + $0x44] sm:$0xf]
    %v171 = vld [vmem:[#allocation7 + $0x48] sm:$0xf]
    %v172 = vld [vmem:[#allocation7 + $0x4c] sm:$0xf]
    %v173 = vld [vmem:[#allocation7 + $0x50] sm:$0xf]
    %v174 = vld [vmem:[#allocation7 + $0x54] sm:$0xf]
    %v175 = vld [vmem:[#allocation7 + $0x58] sm:$0xf]
    %v176 = vld [vmem:[#allocation7 + $0x5c] sm:$0xf]
    %v177 = vld [vmem:[#allocation7 + $0x60] sm:$0xf]
    %v178 = vld [vmem:[#allocation7 + $0x64] sm:$0xf]
    %v179 = vld [vmem:[#allocation7 + $0x68] sm:$0xf]
    %v180 = vld [vmem:[#allocation7 + $0x6c] sm:$0xf]
    %v181 = vld [vmem:[#allocation7 + $0x70] sm:$0xf]
    %v182 = vld [vmem:[#allocation7 + $0x74] sm:$0xf]
    %v183 = vld [vmem:[#allocation7 + $0x78] sm:$0xf]
    %v184 = vld [vmem:[#allocation7 + $0x7c] sm:$0xf]
    %v185 = vld [vmem:[#allocation7 + $0x80] sm:$0xf]
    %v186 = vld [vmem:[#allocation7 + $0x84] sm:$0xf]
    %v187 = vld [vmem:[#allocation7 + $0x88] sm:$0xf]
    %v188 = vld [vmem:[#allocation7 + $0x8c] sm:$0xf]
    %v189 = vld [vmem:[#allocation7 + $0x90] sm:$0xf]
    %v190 = vld [vmem:[#allocation7 + $0x94] sm:$0xf]
    %v191 = vld [vmem:[#allocation7 + $0x98] sm:$0xf]
    %v192 = vld [vmem:[#allocation7 + $0x9c] sm:$0xf]
    %v193 = vld [vmem:[#allocation7 + $0xa0] sm:$0xf]
    %v194 = vld [vmem:[#allocation7 + $0xa4] sm:$0xf]
    %v195 = vld [vmem:[#allocation7 + $0xa8] sm:$0xf]
    %v196 = vld [vmem:[#allocation7 + $0xac] sm:$0xf]
    %v197 = vld [vmem:[#allocation7 + $0xb0] sm:$0xf]
    %v198 = vld [vmem:[#allocation7 + $0xb4] sm:$0xf]
    %v199 = vld [vmem:[#allocation7 + $0xb8] sm:$0xf]
    %v200 = vld [vmem:[#allocation7 + $0xbc] sm:$0xf]
    %v201 = vld [vmem:[#allocation7 + $0xc0] sm:$0xf]
    %v202 = vld [vmem:[#allocation7 + $0xc4] sm:$0xf]
    %v203 = vld [vmem:[#allocation7 + $0xc8] sm:$0xf]
    %v204 = vld [vmem:[#allocation7 + $0xcc] sm:$0xf]
    %v205 = vld [vmem:[#allocation7 + $0xd0] sm:$0xf]
    %v206 = vld [vmem:[#allocation7 + $0xd4] sm:$0xf]
    %v207 = vld [vmem:[#allocation7 + $0xd8] sm:$0xf]
    %v208 = vld [vmem:[#allocation7 + $0xdc] sm:$0xf]
    %v209 = vld [vmem:[#allocation7 + $0xe0] sm:$0xf]
    %v210 = vld [vmem:[#allocation7 + $0xe4] sm:$0xf]
    %v211 = vld [vmem:[#allocation7 + $0xe8] sm:$0xf]
    %v212 = vld [vmem:[#allocation7 + $0xec] sm:$0xf]
    %v213 = vld [vmem:[#allocation7 + $0xf0] sm:$0xf]
    %v214 = vld [vmem:[#allocation7 + $0xf4] sm:$0xf]
    %v215 = vld [vmem:[#allocation7 + $0xf8] sm:$0xf]
    %v216 = vld [vmem:[#allocation7 + $0xfc] sm:$0xf]
    %v217 = vld [vmem:[#allocation7 + $0x100] sm:$0xf]
    %v218 = vld [vmem:[#allocation7 + $0x104] sm:$0xf]
    %v219 = vld [vmem:[#allocation7 + $0x108] sm:$0xf]
    %v220 = vld [vmem:[#allocation7 + $0x10c] sm:$0xf]
    %v221 = vld [vmem:[#allocation7 + $0x110] sm:$0xf]
    %v222 = vld [vmem:[#allocation7 + $0x114] sm:$0xf]
    %v223 = vld [vmem:[#allocation7 + $0x118] sm:$0xf]
    %v224 = vld [vmem:[#allocation7 + $0x11c] sm:$0xf]
    %v225 = vld [vmem:[#allocation7 + $0x120] sm:$0xf]
    %v226 = vld [vmem:[#allocation7 + $0x124] sm:$0xf]
    %v227 = vld [vmem:[#allocation7 + $0x128] sm:$0xf]
    %v228 = vld [vmem:[#allocation7 + $0x12c] sm:$0xf]
    %v229 = vld [vmem:[#allocation7 + $0x130] sm:$0xf]
    %v230 = vld [vmem:[#allocation7 + $0x134] sm:$0xf]
    %v231 = vld [vmem:[#allocation7 + $0x138] sm:$0xf]
    %v232 = vld [vmem:[#allocation7 + $0x13c] sm:$0xf]
    %v233 = vld [vmem:[#allocation7 + $0x140] sm:$0xf]
    %v234 = vld [vmem:[#allocation7 + $0x144] sm:$0xf]
    %v235 = vld [vmem:[#allocation7 + $0x148] sm:$0xf]
    %v236 = vld [vmem:[#allocation7 + $0x14c] sm:$0xf]
    %v237 = vld [vmem:[#allocation7 + $0x150] sm:$0xf]
    %v238 = vld [vmem:[#allocation7 + $0x154] sm:$0xf]
    %v239 = vld [vmem:[#allocation7 + $0x158] sm:$0xf]
    %v240 = vld [vmem:[#allocation7 + $0x15c] sm:$0xf]
    %v241 = vld [vmem:[#allocation7 + $0x160] sm:$0xf]
    %v242 = vld [vmem:[#allocation7 + $0x164] sm:$0xf]
    %v243 = vld [vmem:[#allocation7 + $0x168] sm:$0xf]
    %v244 = vld [vmem:[#allocation7 + $0x16c] sm:$0xf]
    %v245 = vld [vmem:[#allocation7 + $0x170] sm:$0xf]
    %v246 = vld [vmem:[#allocation7 + $0x174] sm:$0xf]
    %v247 = vld [vmem:[#allocation7 + $0x178] sm:$0xf]
    %v248 = vld [vmem:[#allocation7 + $0x17c] sm:$0xf]
    %v249 = vld [vmem:[#allocation7 + $0x180] sm:$0xf]
    %v250 = vld [vmem:[#allocation7 + $0x184] sm:$0xf]
    %v251 = vld [vmem:[#allocation8] sm:$0xf]
    %v252 = vld [vmem:[#allocation8 + $0x4] sm:$0x1]
    %v255 = vunpack.c.l.b16 %v251
    %v256 = vunpack.c.l.b16 %v252
    %v257 = vpack.c.b16 %v256, %v255
    %vm258 = vcmask 80896
    %v260 = vsel %vm258, %v152, 0
    %vm262 = vcmask 1044480
    %v264 = vsel %vm262, %v257, 0
    %266 = vmatpush.bf16.msra.mxu0 0
    %267 = vmatpush.bf16.msra.mxu0 0
    %268 = vmatpush.bf16.msra.mxu0 0
    %269 = vmatpush.bf16.msra.mxu0 0
    %270 = vmatpush.bf16.msra.mxu0 0
    %271 = vmatpush.bf16.msra.mxu0 0
    %272 = vmatpush.bf16.msra.mxu0 0
    %273 = vmatpush.bf16.msra.mxu0 %v264
    %274 = vmatmul.bf16.gmra.mxu0 %v260
    %v275 = vpop.f32.mrf.mxu0
    %v276 = vadd.f32 0.0, %v275
    %v277 = vpop.f32.mrf.mxu0
    %278 = vdwg.mxu0
    %v377 = vunpack.c.l.b16 %v153
    %v378 = vunpack.c.l.b16 %v154
    %v379 = vunpack.c.l.b16 %v155
    %v380 = vunpack.c.l.b16 %v156
    %v381 = vunpack.c.l.b16 %v157
    %v382 = vunpack.c.l.b16 %v158
    %v383 = vunpack.c.l.b16 %v159
    %v384 = vunpack.c.l.b16 %v160
    %v385 = vunpack.c.l.b16 %v161
    %v386 = vunpack.c.l.b16 %v162
    %v387 = vunpack.c.l.b16 %v163
    %v388 = vunpack.c.l.b16 %v164
    %v389 = vunpack.c.l.b16 %v165
    %v390 = vunpack.c.l.b16 %v166
    %v391 = vunpack.c.l.b16 %v167
    %v392 = vunpack.c.l.b16 %v168
    %v393 = vunpack.c.l.b16 %v169
    %v394 = vunpack.c.l.b16 %v170
    %v395 = vunpack.c.l.b16 %v171
    %v396 = vunpack.c.l.b16 %v172
    %v397 = vunpack.c.l.b16 %v173
    %v398 = vunpack.c.l.b16 %v174
    %v399 = vunpack.c.l.b16 %v175
    %v400 = vunpack.c.l.b16 %v176
    %v401 = vunpack.c.l.b16 %v177
    %v402 = vunpack.c.l.b16 %v178
    %v403 = vunpack.c.l.b16 %v179
    %v404 = vunpack.c.l.b16 %v180
    %v405 = vunpack.c.l.b16 %v181
    %v406 = vunpack.c.l.b16 %v182
    %v407 = vunpack.c.l.b16 %v183
    %v408 = vunpack.c.l.b16 %v184
    %v409 = vunpack.c.l.b16 %v185
    %v410 = vunpack.c.l.b16 %v186
    %v411 = vunpack.c.l.b16 %v187
    %v412 = vunpack.c.l.b16 %v188
    %v413 = vunpack.c.l.b16 %v189
    %v414 = vunpack.c.l.b16 %v190
    %v415 = vunpack.c.l.b16 %v191
    %v416 = vunpack.c.l.b16 %v192
    %v417 = vunpack.c.l.b16 %v193
    %v418 = vunpack.c.l.b16 %v194
    %v419 = vunpack.c.l.b16 %v195
    %v420 = vunpack.c.l.b16 %v196
    %v421 = vunpack.c.l.b16 %v197
    %v422 = vunpack.c.l.b16 %v198
    %v423 = vunpack.c.l.b16 %v199
    %v424 = vunpack.c.l.b16 %v200
    %v425 = vunpack.c.l.b16 %v201
    %v426 = vunpack.c.l.b16 %v202
    %v427 = vunpack.c.l.b16 %v203
    %v428 = vunpack.c.l.b16 %v204
    %v429 = vunpack.c.l.b16 %v205
    %v430 = vunpack.c.l.b16 %v206
    %v431 = vunpack.c.l.b16 %v207
    %v432 = vunpack.c.l.b16 %v208
    %v433 = vunpack.c.l.b16 %v209
    %v434 = vunpack.c.l.b16 %v210
    %v435 = vunpack.c.l.b16 %v211
    %v436 = vunpack.c.l.b16 %v212
    %v437 = vunpack.c.l.b16 %v213
    %v438 = vunpack.c.l.b16 %v214
    %v439 = vunpack.c.l.b16 %v215
    %v440 = vunpack.c.l.b16 %v216
    %v441 = vunpack.c.l.b16 %v217
    %v442 = vunpack.c.l.b16 %v218
    %v443 = vunpack.c.l.b16 %v219
    %v444 = vunpack.c.l.b16 %v220
    %v445 = vunpack.c.l.b16 %v221
    %v446 = vunpack.c.l.b16 %v222
    %v447 = vunpack.c.l.b16 %v223
    %v448 = vunpack.c.l.b16 %v224
    %v449 = vunpack.c.l.b16 %v225
    %v450 = vunpack.c.l.b16 %v226
    %v451 = vunpack.c.l.b16 %v227
    %v452 = vunpack.c.l.b16 %v228
    %v453 = vunpack.c.l.b16 %v229
    %v454 = vunpack.c.l.b16 %v230
    %v455 = vunpack.c.l.b16 %v231
    %v456 = vunpack.c.l.b16 %v232
    %v457 = vunpack.c.l.b16 %v233
    %v458 = vunpack.c.l.b16 %v234
    %v459 = vunpack.c.l.b16 %v235
    %v460 = vunpack.c.l.b16 %v236
    %v461 = vunpack.c.l.b16 %v237
    %v462 = vunpack.c.l.b16 %v238
    %v463 = vunpack.c.l.b16 %v239
    %v464 = vunpack.c.l.b16 %v240
    %v465 = vunpack.c.l.b16 %v241
    %v466 = vunpack.c.l.b16 %v242
    %v467 = vunpack.c.l.b16 %v243
    %v468 = vunpack.c.l.b16 %v244
    %v469 = vunpack.c.l.b16 %v245
    %v470 = vunpack.c.l.b16 %v246
    %v471 = vunpack.c.l.b16 %v247
    %v472 = vunpack.c.l.b16 %v248
    %v473 = vunpack.c.l.b16 %v249
    %v474 = vunpack.c.l.b16 %v250
    %v475 = vpack.c.b16 %v378, %v377
    %v476 = vpack.c.b16 %v380, %v379
    %v477 = vpack.c.b16 %v382, %v381
    %v478 = vpack.c.b16 %v384, %v383
    %v479 = vpack.c.b16 %v386, %v385
    %v480 = vpack.c.b16 %v388, %v387
    %v481 = vpack.c.b16 %v390, %v389
    %v482 = vpack.c.b16 %v392, %v391
    %v483 = vpack.c.b16 %v394, %v393
    %v484 = vpack.c.b16 %v396, %v395
    %v485 = vpack.c.b16 %v398, %v397
    %v486 = vpack.c.b16 %v400, %v399
    %v487 = vpack.c.b16 %v402, %v401
    %v488 = vpack.c.b16 %v404, %v403
    %v489 = vpack.c.b16 %v406, %v405
    %v490 = vpack.c.b16 %v408, %v407
    %v491 = vpack.c.b16 %v410, %v409
    %v492 = vpack.c.b16 %v412, %v411
    %v493 = vpack.c.b16 %v414, %v413
    %v494 = vpack.c.b16 %v416, %v415
    %v495 = vpack.c.b16 %v418, %v417
    %v496 = vpack.c.b16 %v420, %v419
    %v497 = vpack.c.b16 %v422, %v421
    %v498 = vpack.c.b16 %v424, %v423
    %v499 = vpack.c.b16 %v426, %v425
    %v500 = vpack.c.b16 %v428, %v427
    %v501 = vpack.c.b16 %v430, %v429
    %v502 = vpack.c.b16 %v432, %v431
    %v503 = vpack.c.b16 %v434, %v433
    %v504 = vpack.c.b16 %v436, %v435
    %v505 = vpack.c.b16 %v438, %v437
    %v506 = vpack.c.b16 %v440, %v439
    %v507 = vpack.c.b16 %v442, %v441
    %v508 = vpack.c.b16 %v444, %v443
    %v509 = vpack.c.b16 %v446, %v445
    %v510 = vpack.c.b16 %v448, %v447
    %v511 = vpack.c.b16 %v450, %v449
    %v512 = vpack.c.b16 %v452, %v451
    %v513 = vpack.c.b16 %v454, %v453
    %v514 = vpack.c.b16 %v456, %v455
    %v515 = vpack.c.b16 %v458, %v457
    %v516 = vpack.c.b16 %v460, %v459
    %v517 = vpack.c.b16 %v462, %v461
    %v518 = vpack.c.b16 %v464, %v463
    %v519 = vpack.c.b16 %v466, %v465
    %v520 = vpack.c.b16 %v468, %v467
    %v521 = vpack.c.b16 %v470, %v469
    %v522 = vpack.c.b16 %v472, %v471
    %v523 = vpack.c.b16 %v474, %v473
    %vm573 = vcmask 130048
    %v575 = vsel %vm573, %v150, 0
    %577 = vmatpush.bf16.msra.mxu0 %v482
    %578 = vmatpush.bf16.msra.mxu0 %v481
    %579 = vmatpush.bf16.msra.mxu0 %v480
    %580 = vmatpush.bf16.msra.mxu0 %v479
    %581 = vmatpush.bf16.msra.mxu0 %v478
    %582 = vmatpush.bf16.msra.mxu0 %v477
    %583 = vmatpush.bf16.msra.mxu0 %v476
    %584 = vmatpush.bf16.msra.mxu0 %v475
    %585 = vmatmul.bf16.gmra.mxu0 %v144
    %v586 = vpop.f32.mrf.mxu0
    %v587 = vadd.f32 %v276, %v586
    %v588 = vpop.f32.mrf.mxu0
    %589 = vdwg.mxu0
    %590 = vmatpush.bf16.msra.mxu0 %v490
    %591 = vmatpush.bf16.msra.mxu0 %v489
    %592 = vmatpush.bf16.msra.mxu0 %v488
    %593 = vmatpush.bf16.msra.mxu0 %v487
    %594 = vmatpush.bf16.msra.mxu0 %v486
    %595 = vmatpush.bf16.msra.mxu0 %v485
    %596 = vmatpush.bf16.msra.mxu0 %v484
    %597 = vmatpush.bf16.msra.mxu0 %v483
    %598 = vmatmul.bf16.gmra.mxu0 %v145
    %v599 = vpop.f32.mrf.mxu0
    %v600 = vadd.f32 %v587, %v599
    %v601 = vpop.f32.mrf.mxu0
    %602 = vdwg.mxu0
    %603 = vmatpush.bf16.msra.mxu0 %v498
    %604 = vmatpush.bf16.msra.mxu0 %v497
    %605 = vmatpush.bf16.msra.mxu0 %v496
    %606 = vmatpush.bf16.msra.mxu0 %v495
    %607 = vmatpush.bf16.msra.mxu0 %v494
    %608 = vmatpush.bf16.msra.mxu0 %v493
    %609 = vmatpush.bf16.msra.mxu0 %v492
    %610 = vmatpush.bf16.msra.mxu0 %v491
    %611 = vmatmul.bf16.gmra.mxu0 %v146
    %v612 = vpop.f32.mrf.mxu0
    %v613 = vadd.f32 %v600, %v612
    %v614 = vpop.f32.mrf.mxu0
    %615 = vdwg.mxu0
    %616 = vmatpush.bf16.msra.mxu0 %v506
    %617 = vmatpush.bf16.msra.mxu0 %v505
    %618 = vmatpush.bf16.msra.mxu0 %v504
    %619 = vmatpush.bf16.msra.mxu0 %v503
    %620 = vmatpush.bf16.msra.mxu0 %v502
    %621 = vmatpush.bf16.msra.mxu0 %v501
    %622 = vmatpush.bf16.msra.mxu0 %v500
    %623 = vmatpush.bf16.msra.mxu0 %v499
    %624 = vmatmul.bf16.gmra.mxu0 %v147
    %v625 = vpop.f32.mrf.mxu0
    %v626 = vadd.f32 %v613, %v625
    %v627 = vpop.f32.mrf.mxu0
    %628 = vdwg.mxu0
    %629 = vmatpush.bf16.msra.mxu0 %v514
    %630 = vmatpush.bf16.msra.mxu0 %v513
    %631 = vmatpush.bf16.msra.mxu0 %v512
    %632 = vmatpush.bf16.msra.mxu0 %v511
    %633 = vmatpush.bf16.msra.mxu0 %v510
    %634 = vmatpush.bf16.msra.mxu0 %v509
    %635 = vmatpush.bf16.msra.mxu0 %v508
    %636 = vmatpush.bf16.msra.mxu0 %v507
    %637 = vmatmul.bf16.gmra.mxu0 %v148
    %v638 = vpop.f32.mrf.mxu0
    %v639 = vadd.f32 %v626, %v638
    %v640 = vpop.f32.mrf.mxu0
    %641 = vdwg.mxu0
    %642 = vmatpush.bf16.msra.mxu0 %v522
    %643 = vmatpush.bf16.msra.mxu0 %v521
    %644 = vmatpush.bf16.msra.mxu0 %v520
    %645 = vmatpush.bf16.msra.mxu0 %v519
    %646 = vmatpush.bf16.msra.mxu0 %v518
    %647 = vmatpush.bf16.msra.mxu0 %v517
    %648 = vmatpush.bf16.msra.mxu0 %v516
    %649 = vmatpush.bf16.msra.mxu0 %v515
    %650 = vmatmul.bf16.gmra.mxu0 %v149
    %v651 = vpop.f32.mrf.mxu0
    %v652 = vadd.f32 %v639, %v651
    %v653 = vpop.f32.mrf.mxu0
    %654 = vdwg.mxu0
    %655 = vmatpush.bf16.msra.mxu0 0
    %656 = vmatpush.bf16.msra.mxu0 0
    %657 = vmatpush.bf16.msra.mxu0 0
    %658 = vmatpush.bf16.msra.mxu0 0
    %659 = vmatpush.bf16.msra.mxu0 0
    %660 = vmatpush.bf16.msra.mxu0 0
    %661 = vmatpush.bf16.msra.mxu0 0
    %662 = vmatpush.bf16.msra.mxu0 %v523
    %663 = vmatmul.bf16.gmra.mxu0 %v575
    %v664 = vpop.f32.mrf.mxu0
    %v665 = vadd.f32 %v652, %v664
    %v666 = vpop.f32.mrf.mxu0
    %667 = vdwg.mxu0
    %v668 = vperm.slane %v136, 0
    %v669 = vadd.f32 %v665, %v668
    %v670 = vmul.f32 %v669, 0.2
    %v671 = vmax.f32 %v669, %v670
    %v672 = vpack.c.bf16 %v671, %v671
    %v673 = vld [vmem:[#allocation10] sm:$0xf]
    %v674 = vld [vmem:[#allocation10 + $0x4] sm:$0xf]
    %v675 = vld [vmem:[#allocation10 + $0x8] sm:$0xf]
    %v676 = vld [vmem:[#allocation10 + $0xc] sm:$0xf]
    %v677 = vld [vmem:[#allocation10 + $0x10] sm:$0xf]
    %v678 = vld [vmem:[#allocation10 + $0x14] sm:$0xf]
    %v679 = vld [vmem:[#allocation10 + $0x18] sm:$0xf]
    %v680 = vld [vmem:[#allocation10 + $0x1c] sm:$0xf]
    %v681 = vld [vmem:[#allocation10 + $0x20] sm:$0xf]
    %v682 = vld [vmem:[#allocation10 + $0x24] sm:$0xf]
    %v683 = vld [vmem:[#allocation10 + $0x28] sm:$0xf]
    %v684 = vld [vmem:[#allocation10 + $0x2c] sm:$0xf]
    %v685 = vld [vmem:[#allocation10 + $0x30] sm:$0xf]
    %v686 = vld [vmem:[#allocation10 + $0x34] sm:$0xf]
    %v687 = vld [vmem:[#allocation10 + $0x38] sm:$0xf]
    %v688 = vld [vmem:[#allocation10 + $0x3c] sm:$0xf]
    %v689 = vperm.slane %v136, 1
    %v706 = vunpack.c.l.b16 %v673
    %v707 = vunpack.c.l.b16 %v674
    %v708 = vunpack.c.l.b16 %v675
    %v709 = vunpack.c.l.b16 %v676
    %v710 = vunpack.c.l.b16 %v677
    %v711 = vunpack.c.l.b16 %v678
    %v712 = vunpack.c.l.b16 %v679
    %v713 = vunpack.c.l.b16 %v680
    %v714 = vunpack.c.l.b16 %v681
    %v715 = vunpack.c.l.b16 %v682
    %v716 = vunpack.c.l.b16 %v683
    %v717 = vunpack.c.l.b16 %v684
    %v718 = vunpack.c.l.b16 %v685
    %v719 = vunpack.c.l.b16 %v686
    %v720 = vunpack.c.l.b16 %v687
    %v721 = vunpack.c.l.b16 %v688
    %v722 = vpack.c.b16 %v707, %v706
    %v723 = vpack.c.b16 %v709, %v708
    %v724 = vpack.c.b16 %v711, %v710
    %v725 = vpack.c.b16 %v713, %v712
    %v726 = vpack.c.b16 %v715, %v714
    %v727 = vpack.c.b16 %v717, %v716
    %v728 = vpack.c.b16 %v719, %v718
    %v729 = vpack.c.b16 %v721, %v720
    %738 = vmatpush.bf16.msra.mxu0 %v729
    %739 = vmatpush.bf16.msra.mxu0 %v728
    %740 = vmatpush.bf16.msra.mxu0 %v727
    %741 = vmatpush.bf16.msra.mxu0 %v726
    %742 = vmatpush.bf16.msra.mxu0 %v725
    %743 = vmatpush.bf16.msra.mxu0 %v724
    %744 = vmatpush.bf16.msra.mxu0 %v723
    %745 = vmatpush.bf16.msra.mxu0 %v722
    %746 = vmatmul.bf16.gmra.mxu0 %v672
    %v747 = vpop.f32.mrf.mxu0
    %v748 = vadd.f32 %v689, %v747
    %v749 = vpop.f32.mrf.mxu0
    %750 = vdwg.mxu0
    %v751 = vmul.f32 %v748, 0.2
    %v752 = vmax.f32 %v748, %v751
    %v753 = vpack.c.bf16 %v752, %v752
    %v754 = vld [vmem:[#allocation11] sm:$0xf]
    %v755 = vld [vmem:[#allocation11 + $0x4] sm:$0xf]
    %v756 = vld [vmem:[#allocation11 + $0x8] sm:$0xf]
    %v757 = vld [vmem:[#allocation11 + $0xc] sm:$0xf]
    %v758 = vld [vmem:[#allocation11 + $0x10] sm:$0xf]
    %v759 = vld [vmem:[#allocation11 + $0x14] sm:$0xf]
    %v760 = vld [vmem:[#allocation11 + $0x18] sm:$0xf]
    %v761 = vld [vmem:[#allocation11 + $0x1c] sm:$0xf]
    %v762 = vld [vmem:[#allocation11 + $0x20] sm:$0xf]
    %v763 = vld [vmem:[#allocation11 + $0x24] sm:$0xf]
    %v764 = vld [vmem:[#allocation11 + $0x28] sm:$0xf]
    %v765 = vld [vmem:[#allocation11 + $0x2c] sm:$0xf]
    %v766 = vld [vmem:[#allocation11 + $0x30] sm:$0xf]
    %v767 = vld [vmem:[#allocation11 + $0x34] sm:$0xf]
    %v768 = vld [vmem:[#allocation11 + $0x38] sm:$0xf]
    %v769 = vld [vmem:[#allocation11 + $0x3c] sm:$0xf]
    %v770 = vperm.slane %v136, 2
    %v787 = vunpack.c.l.b16 %v754
    %v788 = vunpack.c.l.b16 %v755
    %v789 = vunpack.c.l.b16 %v756
    %v790 = vunpack.c.l.b16 %v757
    %v791 = vunpack.c.l.b16 %v758
    %v792 = vunpack.c.l.b16 %v759
    %v793 = vunpack.c.l.b16 %v760
    %v794 = vunpack.c.l.b16 %v761
    %v795 = vunpack.c.l.b16 %v762
    %v796 = vunpack.c.l.b16 %v763
    %v797 = vunpack.c.l.b16 %v764
    %v798 = vunpack.c.l.b16 %v765
    %v799 = vunpack.c.l.b16 %v766
    %v800 = vunpack.c.l.b16 %v767
    %v801 = vunpack.c.l.b16 %v768
    %v802 = vunpack.c.l.b16 %v769
    %v803 = vpack.c.b16 %v788, %v787
    %v804 = vpack.c.b16 %v790, %v789
    %v805 = vpack.c.b16 %v792, %v791
    %v806 = vpack.c.b16 %v794, %v793
    %v807 = vpack.c.b16 %v796, %v795
    %v808 = vpack.c.b16 %v798, %v797
    %v809 = vpack.c.b16 %v800, %v799
    %v810 = vpack.c.b16 %v802, %v801
    %819 = vmatpush.bf16.msra.mxu0 %v810
    %820 = vmatpush.bf16.msra.mxu0 %v809
    %821 = vmatpush.bf16.msra.mxu0 %v808
    %822 = vmatpush.bf16.msra.mxu0 %v807
    %823 = vmatpush.bf16.msra.mxu0 %v806
    %824 = vmatpush.bf16.msra.mxu0 %v805
    %825 = vmatpush.bf16.msra.mxu0 %v804
    %826 = vmatpush.bf16.msra.mxu0 %v803
    %827 = vmatmul.bf16.gmra.mxu0 %v753
    %v828 = vpop.f32.mrf.mxu0
    %v829 = vadd.f32 %v770, %v828
    %v830 = vpop.f32.mrf.mxu0
    %831 = vdwg.mxu0
    %v832 = vmul.f32 %v829, 0.2
    %v833 = vmax.f32 %v829, %v832
    %v834 = vpack.c.bf16 %v833, %v833
    %v835 = vld [vmem:[#allocation13] sm:$0xf]
    %v836 = vld [vmem:[#allocation13 + $0x4] sm:$0xf]
    %v837 = vld [vmem:[#allocation13 + $0x8] sm:$0xf]
    %v838 = vld [vmem:[#allocation13 + $0xc] sm:$0xf]
    %v839 = vld [vmem:[#allocation13 + $0x10] sm:$0xf]
    %v840 = vld [vmem:[#allocation13 + $0x14] sm:$0xf]
    %v841 = vld [vmem:[#allocation13 + $0x18] sm:$0xf]
    %v842 = vld [vmem:[#allocation13 + $0x1c] sm:$0xf]
    %v843 = vld [vmem:[#allocation13 + $0x20] sm:$0xf]
    %v844 = vld [vmem:[#allocation13 + $0x24] sm:$0xf]
    %v845 = vld [vmem:[#allocation13 + $0x28] sm:$0xf]
    %v846 = vld [vmem:[#allocation13 + $0x2c] sm:$0xf]
    %v847 = vld [vmem:[#allocation13 + $0x30] sm:$0xf]
    %v848 = vld [vmem:[#allocation13 + $0x34] sm:$0xf]
    %v849 = vld [vmem:[#allocation13 + $0x38] sm:$0xf]
    %v850 = vld [vmem:[#allocation13 + $0x3c] sm:$0xf]
    %v851 = vperm.slane %v136, 3
    %v868 = vunpack.c.l.b16 %v835
    %v869 = vunpack.c.l.b16 %v836
    %v870 = vunpack.c.l.b16 %v837
    %v871 = vunpack.c.l.b16 %v838
    %v872 = vunpack.c.l.b16 %v839
    %v873 = vunpack.c.l.b16 %v840
    %v874 = vunpack.c.l.b16 %v841
    %v875 = vunpack.c.l.b16 %v842
    %v876 = vunpack.c.l.b16 %v843
    %v877 = vunpack.c.l.b16 %v844
    %v878 = vunpack.c.l.b16 %v845
    %v879 = vunpack.c.l.b16 %v846
    %v880 = vunpack.c.l.b16 %v847
    %v881 = vunpack.c.l.b16 %v848
    %v882 = vunpack.c.l.b16 %v849
    %v883 = vunpack.c.l.b16 %v850
    %v884 = vpack.c.b16 %v869, %v868
    %v885 = vpack.c.b16 %v871, %v870
    %v886 = vpack.c.b16 %v873, %v872
    %v887 = vpack.c.b16 %v875, %v874
    %v888 = vpack.c.b16 %v877, %v876
    %v889 = vpack.c.b16 %v879, %v878
    %v890 = vpack.c.b16 %v881, %v880
    %v891 = vpack.c.b16 %v883, %v882
    %900 = vmatpush.bf16.msra.mxu0 %v891
    %901 = vmatpush.bf16.msra.mxu0 %v890
    %902 = vmatpush.bf16.msra.mxu0 %v889
    %903 = vmatpush.bf16.msra.mxu0 %v888
    %904 = vmatpush.bf16.msra.mxu0 %v887
    %905 = vmatpush.bf16.msra.mxu0 %v886
    %906 = vmatpush.bf16.msra.mxu0 %v885
    %907 = vmatpush.bf16.msra.mxu0 %v884
    %908 = vmatmul.bf16.gmra.mxu0 %v834
    %v909 = vpop.f32.mrf.mxu0
    %v910 = vadd.f32 %v851, %v909
    %v911 = vpop.f32.mrf.mxu0
    %912 = vdwg.mxu0
    %v913 = vpack.c.bf16 %v910, %v910
    %914 = vst [vmem:[#allocation14] sm:$0xf] %v913
    // Predicated region
    $region62: #{tpu_custom_call.1} parent=1 // pred_check
      _
    $region63: #{tpu_custom_call.1} parent=1 // pred_check_branch
      %916 = sbr.rel (0) target = $region65
    $region64: #{tpu_custom_call.1} parent=1 // pred_region
      %918 = vsyncadd [#allocation4], 0
      %s920 = sshll.u32 [#allocation14], 4
      %s921 = int_to_ptr.vmem [resolvable:$true] %s920
      %s922 = sshll.u32 %s8, 4
      %s923 = int_to_ptr.hbm [resolvable:$true] %s922
      %925 = dma.vmem_to_hbm [thread:$0]  %s921, 64, %s923, [#allocation4]
    $region65: #{tpu_custom_call.1} parent=1 // pred_fallthru
      _
    // Predicated region
    $region66: #{tpu_custom_call.1} parent=1 // pred_check
      _
    $region67: #{tpu_custom_call.1} parent=1 // pred_check_branch
      %927 = sbr.rel (0) target = $region69
    $region68: #{tpu_custom_call.1} parent=1 // pred_region
      %929 = dma.done [#allocation4], 64
    $region69: #{tpu_custom_call.1} parent=1 // pred_fallthru
      _
    %930 = vsyncpa [#allocation3], 1
    %931 = vsyncpa [#allocation6], 1
    %932 = vsyncpa [#allocation9], 1
    %933 = vsyncpa [#allocation12], 1
    %934 = vsyncpa [#allocation4], 1

</llo_original>
